<compile_context>
chip_gen: v7x
topology: tpu7x:2x2x1
jax: 0.10.0
libtpu: 0.0.40
codegen_flags: <defaults>
</compile_context>

<pallas_src>
import functools
import math

import jax
import jax.numpy as jnp
from jax.experimental import pallas as pl
from jax.experimental.pallas import tpu as pltpu

LN_EPS = 1e-5  # PyTorch nn.LayerNorm default


def _round_up(x, m):
    return (x + m - 1) // m * m


def _output_conv_kernel(
    x_ref,
    w1_ref, p1_ref,
    w2_ref, p2_ref,
    w3_ref, p3_ref,
    w4_ref, b4_ref,
    o_ref,
    *, compute_dtype,
):
    """One (batch, time-tile) block, kept in NCL orientation throughout.

    x_ref : (1, C_in, tT)    activations (channels on sublanes, time on lanes)
    w*_ref: (C_out, C_in)    Conv1d(k=1) weights, PyTorch orientation
    p*_ref: (C_out, 3)       packed f32 columns [bias, gamma, beta]
    b4_ref: (numClasses, 1)  final conv bias
    o_ref : (1, numClasses, tT)
    """
    h = x_ref[0].astype(compute_dtype)                          # (C_in, tT)

    def conv_ln_relu(h, w_ref, p_ref):
        # Conv1d(k=1): (C_out, C_in) @ (C_in, tT) -> f32 (C_out, tT) on the MXU.
        h = jnp.dot(w_ref[...], h, preferred_element_type=jnp.float32)
        h = h + p_ref[:, 0:1]                                    # + bias
        # LayerNorm over channels (sublane axis). Biased variance, like torch;
        # one-pass stats in f32 (no masking needed: channel extent is exact).
        inv_c = 1.0 / h.shape[0]
        mean = jnp.sum(h, axis=0, keepdims=True) * inv_c         # (1, tT)
        var = jnp.sum(h * h, axis=0, keepdims=True) * inv_c - mean * mean
        h = (h - mean) * jax.lax.rsqrt(var + LN_EPS)
        h = h * p_ref[:, 1:2] + p_ref[:, 2:3]                    # * gamma + beta
        return jnp.maximum(h, 0.0).astype(compute_dtype)         # ReLU

    h = conv_ln_relu(h, w1_ref, p1_ref)
    h = conv_ln_relu(h, w2_ref, p2_ref)
    h = conv_ln_relu(h, w3_ref, p3_ref)

    out = jnp.dot(w4_ref[...], h, preferred_element_type=jnp.float32) + b4_ref[...]
    o_ref[0] = out.astype(o_ref.dtype)                           # (numClasses, tT)


def output_conv_forward(x_ncl, params, *, block_t=2048,
                        compute_dtype=jnp.bfloat16, out_dtype=None):
    """x_ncl: (B, dModel, T) -> (B, numClasses, T), matching the PyTorch module.

    Set out_dtype=jnp.bfloat16 if downstream (softmax/CTC) accepts bf16 logits:
    it halves output HBM traffic.
    """
    B, dModel, T = x_ncl.shape
    dHalf = dModel // 2
    numClasses = params["w4"].shape[0]
    out_dtype = x_ncl.dtype if out_dtype is None else out_dtype

    # ---- VMEM budget & time-tile choice (generation aware) ------------------
    try:
        info = pltpu.get_tpu_info()
        vmem_cap = int(getattr(info, "vmem_capacity_bytes", 64 * 1024 * 1024))
    except Exception:  # non-TPU tracing / older jax: assume the smallest (v7x)
        vmem_cap = 64 * 1024 * 1024
    vmem_budget = min(int(vmem_cap * 0.7), 96 * 1024 * 1024)

    out_isz = jnp.dtype(out_dtype).itemsize
    cdt_isz = jnp.dtype(compute_dtype).itemsize
    # Rough per-timestep VMEM bytes: double-buffered in/out blocks + live temps.
    per_t = (2 * 4 * dModel                       # x block (f32), double-buffered
             + 2 * out_isz * max(numClasses, 8)   # out block, double-buffered
             + 3 * 4 * dModel                     # live f32 intermediates
             + 2 * cdt_isz * dModel)              # live bf16 activations
    max_t = max(128, (vmem_budget // per_t) // 128 * 128)
    bt = min(block_t, max_t)
    if B == 1 and T > 256:
        # Keep >= 2 grid steps so both v7x TensorCores get work.
        bt = min(bt, max(128, _round_up(pl.cdiv(T, 2), 128)))

    if T <= bt:
        tT, t_pad = T, T                          # one tile spans all of T
        x_p = x_ncl
    else:
        tT = max(128, bt // 128 * 128)            # lane dim: multiple of 128
        t_pad = _round_up(T, tT)
        x_p = jnp.pad(x_ncl, ((0, 0), (0, 0), (0, t_pad - T))) if t_pad != T else x_ncl

    grid = (B, t_pad // tT)

    # ---- parameters: weights in compute dtype, (bias,gamma,beta) packed f32 --
    def pack(b, g, be):
        return jnp.stack([b.reshape(-1), g.reshape(-1), be.reshape(-1)],
                         axis=1).astype(jnp.float32)             # (C, 3)

    w1 = params["w1"].astype(compute_dtype)
    w2 = params["w2"].astype(compute_dtype)
    w3 = params["w3"].astype(compute_dtype)
    w4 = params["w4"].astype(compute_dtype)
    p1 = pack(params["b1"], params["g1"], params["be1"])
    p2 = pack(params["b2"], params["g2"], params["be2"])
    p3 = pack(params["b3"], params["g3"], params["be3"])
    b4 = params["b4"].reshape(-1, 1).astype(jnp.float32)
    weights = (w1, p1, w2, p2, w3, p3, w4, b4)

    in_specs = [pl.BlockSpec((1, dModel, tT), lambda b, t: (b, 0, t))] + [
        pl.BlockSpec(p.shape, lambda b, t: (0, 0)) for p in weights
    ]
    out_spec = pl.BlockSpec((1, numClasses, tT), lambda b, t: (b, 0, t))

    # ---- advisory cost estimate ---------------------------------------------
    w_elems = dModel * dModel + dModel * dHalf + dHalf * dHalf + dHalf * numClasses
    flops = 2 * B * t_pad * w_elems
    bytes_accessed = int(
        B * dModel * t_pad * jnp.dtype(x_ncl.dtype).itemsize     # x (read as-is)
        + B * numClasses * t_pad * out_isz                       # out
        + w_elems * cdt_isz                                      # conv weights
        + (3 * (dModel + 2 * dHalf) + numClasses) * 4            # bias/gamma/beta
    )
    cost = pl.CostEstimate(flops=int(flops),
                           transcendentals=int(3 * B * t_pad),
                           bytes_accessed=bytes_accessed)

    kernel = functools.partial(_output_conv_kernel, compute_dtype=compute_dtype)

    out = pl.pallas_call(
        kernel,
        out_shape=jax.ShapeDtypeStruct((B, numClasses, t_pad), out_dtype),
        grid_spec=pltpu.PrefetchScalarGridSpec(
            num_scalar_prefetch=0,
            grid=grid,
            in_specs=in_specs,
            out_specs=out_spec,
        ),
        compiler_params=pltpu.CompilerParams(
            dimension_semantics=("parallel", "parallel"),
            vmem_limit_bytes=int(vmem_budget),
        ),
        cost_estimate=cost,
    )(x_p, *weights)

    if t_pad != T:
        out = out[:, :, :T]
    return out


def init_params(key, dModel, numClasses, dtype=jnp.float32):
    """Deterministic synthetic parameters. Conv weights in PyTorch layout (out, in)."""
    dHalf = dModel // 2
    keys = jax.random.split(key, 8)

    def w(k, c_out, c_in):
        bound = 1.0 / math.sqrt(c_in)
        return jax.random.uniform(k, (c_out, c_in), dtype, -bound, bound)

    def b(k, c_in, c_out):
        bound = 1.0 / math.sqrt(c_in)
        return jax.random.uniform(k, (c_out,), dtype, -bound, bound)

    return {
        "w1": w(keys[0], dModel, dModel), "b1": b(keys[1], dModel, dModel),
        "g1": jnp.ones((dModel,), dtype), "be1": jnp.zeros((dModel,), dtype),
        "w2": w(keys[2], dHalf, dModel), "b2": b(keys[3], dModel, dHalf),
        "g2": jnp.ones((dHalf,), dtype), "be2": jnp.zeros((dHalf,), dtype),
        "w3": w(keys[4], dHalf, dHalf), "b3": b(keys[5], dHalf, dHalf),
        "g3": jnp.ones((dHalf,), dtype), "be3": jnp.zeros((dHalf,), dtype),
        "w4": w(keys[6], numClasses, dHalf), "b4": b(keys[7], dHalf, numClasses),
    }


def _reference_forward(x_ncl, params):
    """Pure-JAX f32 reference with identical semantics to the PyTorch module."""
    h = jnp.transpose(x_ncl, (0, 2, 1)).astype(jnp.float32)  # (B, T, C)
    p = {k: v.astype(jnp.float32) for k, v in params.items()}

    def ln(x, g, b):
        m = jnp.mean(x, -1, keepdims=True)
        c = x - m
        v = jnp.mean(c * c, -1, keepdims=True)
        return c * jax.lax.rsqrt(v + LN_EPS) * g + b

    h = jnp.maximum(ln(h @ p["w1"].T + p["b1"], p["g1"], p["be1"]), 0.0)
    h = jnp.maximum(ln(h @ p["w2"].T + p["b2"], p["g2"], p["be2"]), 0.0)
    h = jnp.maximum(ln(h @ p["w3"].T + p["b3"], p["g3"], p["be3"]), 0.0)
    h = h @ p["w4"].T + p["b4"]
    return jnp.transpose(h, (0, 2, 1)).astype(x_ncl.dtype)


if __name__ == "__main__":
    B, dModel, T, numClasses = 2, 32, 16, 40

    key = jax.random.PRNGKey(0)
    k_x, k_p = jax.random.split(key)
    x = jax.random.normal(k_x, (B, dModel, T), jnp.float32)
    params = init_params(k_p, dModel, numClasses)

    ref = jax.block_until_ready(_reference_forward(x, params))

    # Semantics check, f32 compute path. Tolerance covers TPU default-precision
    # matmuls (bf16-truncated inputs) combined with the kernel's different-but-
    # equivalent contraction orientation (W @ X vs X @ W^T in the reference).
    out_f32 = jax.block_until_ready(
        output_conv_forward(x, params, compute_dtype=jnp.float32)
    )
    assert out_f32.shape == (B, numClasses, T)
    err32 = float(jnp.max(jnp.abs(out_f32 - ref)))
    assert err32 < 5e-2, f"f32 path mismatch vs reference: {err32}"

    # Fast path (default): bf16 MXU matmuls with f32 LayerNorm; loose tolerance.
    out = jax.block_until_ready(output_conv_forward(x, params))
    assert out.shape == (B, numClasses, T)
    err = float(jnp.max(jnp.abs(out.astype(jnp.float32) - ref.astype(jnp.float32))))
    assert err < 1.5e-1, f"bf16 path error too large: {err}"

    # Exercise the multi-tile / T-padding path (grid > 1 along time).
    B2, d2, T2 = 2, 64, 300
    x2 = jax.random.normal(jax.random.PRNGKey(1), (B2, d2, T2), jnp.float32)
    params2 = init_params(jax.random.PRNGKey(2), d2, numClasses)
    ref2 = _reference_forward(x2, params2)
    out2 = jax.block_until_ready(
        output_conv_forward(x2, params2, block_t=128, compute_dtype=jnp.float32)
    )
    assert out2.shape == (B2, numClasses, T2)
    err2 = float(jnp.max(jnp.abs(out2 - ref2)))
    assert err2 < 5e-2, f"tiled f32 path mismatch vs reference: {err2}"

    print("KERNEL_OK")
</pallas_src>

<mosaic_0001>
module attributes {stable_mosaic.version = 11 : i64} {
  func.func @_output_conv_kernel(%arg0: i32, %arg1: i32, %arg2: memref<1x32x16xf32, #tpu.memory_space<vmem>>, %arg3: memref<32x32xf32, #tpu.memory_space<vmem>>, %arg4: memref<32x3xf32, #tpu.memory_space<vmem>>, %arg5: memref<16x32xf32, #tpu.memory_space<vmem>>, %arg6: memref<16x3xf32, #tpu.memory_space<vmem>>, %arg7: memref<16x16xf32, #tpu.memory_space<vmem>>, %arg8: memref<16x3xf32, #tpu.memory_space<vmem>>, %arg9: memref<40x16xf32, #tpu.memory_space<vmem>>, %arg10: memref<40x1xf32, #tpu.memory_space<vmem>>, %arg11: memref<1x40x16xf32, #tpu.memory_space<vmem>>) attributes {dimension_semantics = [#tpu.dimension_semantics<parallel>, #tpu.dimension_semantics<parallel>], iteration_bounds = array<i64: 2, 1>, scalar_prefetch = 0 : i64, scratch_operands = 0 : i64, tpu.core_type = #tpu.core_type<tc>, window_params = [{transform_indices = @transform_0, window_bounds = array<i64: 1, 32, 16>}, {pipeline_mode = #tpu.pipeline_mode<synchronous>, transform_indices = @transform_1, window_bounds = array<i64: 32, 32>}, {pipeline_mode = #tpu.pipeline_mode<synchronous>, transform_indices = @transform_2, window_bounds = array<i64: 32, 3>}, {pipeline_mode = #tpu.pipeline_mode<synchronous>, transform_indices = @transform_3, window_bounds = array<i64: 16, 32>}, {pipeline_mode = #tpu.pipeline_mode<synchronous>, transform_indices = @transform_4, window_bounds = array<i64: 16, 3>}, {pipeline_mode = #tpu.pipeline_mode<synchronous>, transform_indices = @transform_5, window_bounds = array<i64: 16, 16>}, {pipeline_mode = #tpu.pipeline_mode<synchronous>, transform_indices = @transform_6, window_bounds = array<i64: 16, 3>}, {pipeline_mode = #tpu.pipeline_mode<synchronous>, transform_indices = @transform_7, window_bounds = array<i64: 40, 16>}, {pipeline_mode = #tpu.pipeline_mode<synchronous>, transform_indices = @transform_8, window_bounds = array<i64: 40, 1>}, {transform_indices = @transform_9, window_bounds = array<i64: 1, 40, 16>}]} {
    %c0 = arith.constant 0 : index
    %c0_0 = arith.constant 0 : index
    %c0_1 = arith.constant 0 : index
    %0 = vector.load %arg2[%c0, %c0_0, %c0_1] : memref<1x32x16xf32, #tpu.memory_space<vmem>>, vector<1x32x16xf32>
    %1 = vector.shape_cast %0 : vector<1x32x16xf32> to vector<32x16xf32>
    %c0_2 = arith.constant 0 : index
    %c0_3 = arith.constant 0 : index
    %2 = vector.load %arg3[%c0_2, %c0_3] : memref<32x32xf32, #tpu.memory_space<vmem>>, vector<32x32xf32>
    %cst = arith.constant dense<0.000000e+00> : vector<32x16xf32>
    %3 = tpu.matmul %2, %1, %cst {dimension_numbers = #tpu.dot_dimension_numbers<[1], [0], [0], [1], [0, 0, 1, 1], [], []>} : vector<32x32xf32>, vector<32x16xf32>, vector<32x16xf32> -> vector<32x16xf32>
    %c0_4 = arith.constant 0 : index
    %c0_5 = arith.constant 0 : index
    %4 = vector.load %arg4[%c0_4, %c0_5] : memref<32x3xf32, #tpu.memory_space<vmem>>, vector<32x1xf32>
    %5 = vector.broadcast %4 : vector<32x1xf32> to vector<32x16xf32>
    %6 = arith.addf %3, %5 : vector<32x16xf32>
    %cst_6 = arith.constant dense<0.000000e+00> : vector<16xf32>
    %7 = vector.multi_reduction <add>, %6, %cst_6 [0] : vector<32x16xf32> to vector<16xf32>
    %8 = vector.shape_cast %7 : vector<16xf32> to vector<1x16xf32>
    %cst_7 = arith.constant 3.125000e-02 : f32
    %9 = vector.broadcast %cst_7 : f32 to vector<1x16xf32>
    %10 = arith.mulf %8, %9 : vector<1x16xf32>
    %11 = arith.mulf %6, %6 : vector<32x16xf32>
    %cst_8 = arith.constant dense<0.000000e+00> : vector<16xf32>
    %12 = vector.multi_reduction <add>, %11, %cst_8 [0] : vector<32x16xf32> to vector<16xf32>
    %13 = vector.shape_cast %12 : vector<16xf32> to vector<1x16xf32>
    %cst_9 = arith.constant 3.125000e-02 : f32
    %14 = vector.broadcast %cst_9 : f32 to vector<1x16xf32>
    %15 = arith.mulf %13, %14 : vector<1x16xf32>
    %16 = arith.mulf %10, %10 : vector<1x16xf32>
    %17 = arith.subf %15, %16 : vector<1x16xf32>
    %18 = vector.broadcast %10 : vector<1x16xf32> to vector<32x16xf32>
    %19 = arith.subf %6, %18 : vector<32x16xf32>
    %cst_10 = arith.constant 9.99999974E-6 : f32
    %20 = vector.broadcast %cst_10 : f32 to vector<1x16xf32>
    %21 = arith.addf %17, %20 : vector<1x16xf32>
    %22 = math.rsqrt %21 : vector<1x16xf32>
    %23 = vector.broadcast %22 : vector<1x16xf32> to vector<32x16xf32>
    %24 = arith.mulf %19, %23 : vector<32x16xf32>
    %c0_11 = arith.constant 0 : index
    %c1 = arith.constant 1 : index
    %25 = vector.load %arg4[%c0_11, %c1] : memref<32x3xf32, #tpu.memory_space<vmem>>, vector<32x1xf32>
    %26 = vector.broadcast %25 : vector<32x1xf32> to vector<32x16xf32>
    %27 = arith.mulf %24, %26 : vector<32x16xf32>
    %c0_12 = arith.constant 0 : index
    %c2 = arith.constant 2 : index
    %28 = vector.load %arg4[%c0_12, %c2] : memref<32x3xf32, #tpu.memory_space<vmem>>, vector<32x1xf32>
    %29 = vector.broadcast %28 : vector<32x1xf32> to vector<32x16xf32>
    %30 = arith.addf %27, %29 : vector<32x16xf32>
    %cst_13 = arith.constant 0.000000e+00 : f32
    %31 = vector.broadcast %cst_13 : f32 to vector<32x16xf32>
    %32 = arith.maximumf %30, %31 : vector<32x16xf32>
    %c0_14 = arith.constant 0 : index
    %c0_15 = arith.constant 0 : index
    %33 = vector.load %arg5[%c0_14, %c0_15] : memref<16x32xf32, #tpu.memory_space<vmem>>, vector<16x32xf32>
    %cst_16 = arith.constant dense<0.000000e+00> : vector<16x16xf32>
    %34 = tpu.matmul %33, %32, %cst_16 {dimension_numbers = #tpu.dot_dimension_numbers<[1], [0], [0], [1], [0, 0, 1, 1], [], []>} : vector<16x32xf32>, vector<32x16xf32>, vector<16x16xf32> -> vector<16x16xf32>
    %c0_17 = arith.constant 0 : index
    %c0_18 = arith.constant 0 : index
    %35 = vector.load %arg6[%c0_17, %c0_18] : memref<16x3xf32, #tpu.memory_space<vmem>>, vector<16x1xf32>
    %36 = vector.broadcast %35 : vector<16x1xf32> to vector<16x16xf32>
    %37 = arith.addf %34, %36 : vector<16x16xf32>
    %cst_19 = arith.constant dense<0.000000e+00> : vector<16xf32>
    %38 = vector.multi_reduction <add>, %37, %cst_19 [0] : vector<16x16xf32> to vector<16xf32>
    %39 = vector.shape_cast %38 : vector<16xf32> to vector<1x16xf32>
    %cst_20 = arith.constant 6.250000e-02 : f32
    %40 = vector.broadcast %cst_20 : f32 to vector<1x16xf32>
    %41 = arith.mulf %39, %40 : vector<1x16xf32>
    %42 = arith.mulf %37, %37 : vector<16x16xf32>
    %cst_21 = arith.constant dense<0.000000e+00> : vector<16xf32>
    %43 = vector.multi_reduction <add>, %42, %cst_21 [0] : vector<16x16xf32> to vector<16xf32>
    %44 = vector.shape_cast %43 : vector<16xf32> to vector<1x16xf32>
    %cst_22 = arith.constant 6.250000e-02 : f32
    %45 = vector.broadcast %cst_22 : f32 to vector<1x16xf32>
    %46 = arith.mulf %44, %45 : vector<1x16xf32>
    %47 = arith.mulf %41, %41 : vector<1x16xf32>
    %48 = arith.subf %46, %47 : vector<1x16xf32>
    %49 = vector.broadcast %41 : vector<1x16xf32> to vector<16x16xf32>
    %50 = arith.subf %37, %49 : vector<16x16xf32>
    %cst_23 = arith.constant 9.99999974E-6 : f32
    %51 = vector.broadcast %cst_23 : f32 to vector<1x16xf32>
    %52 = arith.addf %48, %51 : vector<1x16xf32>
    %53 = math.rsqrt %52 : vector<1x16xf32>
    %54 = vector.broadcast %53 : vector<1x16xf32> to vector<16x16xf32>
    %55 = arith.mulf %50, %54 : vector<16x16xf32>
    %c0_24 = arith.constant 0 : index
    %c1_25 = arith.constant 1 : index
    %56 = vector.load %arg6[%c0_24, %c1_25] : memref<16x3xf32, #tpu.memory_space<vmem>>, vector<16x1xf32>
    %57 = vector.broadcast %56 : vector<16x1xf32> to vector<16x16xf32>
    %58 = arith.mulf %55, %57 : vector<16x16xf32>
    %c0_26 = arith.constant 0 : index
    %c2_27 = arith.constant 2 : index
    %59 = vector.load %arg6[%c0_26, %c2_27] : memref<16x3xf32, #tpu.memory_space<vmem>>, vector<16x1xf32>
    %60 = vector.broadcast %59 : vector<16x1xf32> to vector<16x16xf32>
    %61 = arith.addf %58, %60 : vector<16x16xf32>
    %cst_28 = arith.constant 0.000000e+00 : f32
    %62 = vector.broadcast %cst_28 : f32 to vector<16x16xf32>
    %63 = arith.maximumf %61, %62 : vector<16x16xf32>
    %c0_29 = arith.constant 0 : index
    %c0_30 = arith.constant 0 : index
    %64 = vector.load %arg7[%c0_29, %c0_30] : memref<16x16xf32, #tpu.memory_space<vmem>>, vector<16x16xf32>
    %cst_31 = arith.constant dense<0.000000e+00> : vector<16x16xf32>
    %65 = tpu.matmul %64, %63, %cst_31 {dimension_numbers = #tpu.dot_dimension_numbers<[1], [0], [0], [1], [0, 0, 1, 1], [], []>} : vector<16x16xf32>, vector<16x16xf32>, vector<16x16xf32> -> vector<16x16xf32>
    %c0_32 = arith.constant 0 : index
    %c0_33 = arith.constant 0 : index
    %66 = vector.load %arg8[%c0_32, %c0_33] : memref<16x3xf32, #tpu.memory_space<vmem>>, vector<16x1xf32>
    %67 = vector.broadcast %66 : vector<16x1xf32> to vector<16x16xf32>
    %68 = arith.addf %65, %67 : vector<16x16xf32>
    %cst_34 = arith.constant dense<0.000000e+00> : vector<16xf32>
    %69 = vector.multi_reduction <add>, %68, %cst_34 [0] : vector<16x16xf32> to vector<16xf32>
    %70 = vector.shape_cast %69 : vector<16xf32> to vector<1x16xf32>
    %cst_35 = arith.constant 6.250000e-02 : f32
    %71 = vector.broadcast %cst_35 : f32 to vector<1x16xf32>
    %72 = arith.mulf %70, %71 : vector<1x16xf32>
    %73 = arith.mulf %68, %68 : vector<16x16xf32>
    %cst_36 = arith.constant dense<0.000000e+00> : vector<16xf32>
    %74 = vector.multi_reduction <add>, %73, %cst_36 [0] : vector<16x16xf32> to vector<16xf32>
    %75 = vector.shape_cast %74 : vector<16xf32> to vector<1x16xf32>
    %cst_37 = arith.constant 6.250000e-02 : f32
    %76 = vector.broadcast %cst_37 : f32 to vector<1x16xf32>
    %77 = arith.mulf %75, %76 : vector<1x16xf32>
    %78 = arith.mulf %72, %72 : vector<1x16xf32>
    %79 = arith.subf %77, %78 : vector<1x16xf32>
    %80 = vector.broadcast %72 : vector<1x16xf32> to vector<16x16xf32>
    %81 = arith.subf %68, %80 : vector<16x16xf32>
    %cst_38 = arith.constant 9.99999974E-6 : f32
    %82 = vector.broadcast %cst_38 : f32 to vector<1x16xf32>
    %83 = arith.addf %79, %82 : vector<1x16xf32>
    %84 = math.rsqrt %83 : vector<1x16xf32>
    %85 = vector.broadcast %84 : vector<1x16xf32> to vector<16x16xf32>
    %86 = arith.mulf %81, %85 : vector<16x16xf32>
    %c0_39 = arith.constant 0 : index
    %c1_40 = arith.constant 1 : index
    %87 = vector.load %arg8[%c0_39, %c1_40] : memref<16x3xf32, #tpu.memory_space<vmem>>, vector<16x1xf32>
    %88 = vector.broadcast %87 : vector<16x1xf32> to vector<16x16xf32>
    %89 = arith.mulf %86, %88 : vector<16x16xf32>
    %c0_41 = arith.constant 0 : index
    %c2_42 = arith.constant 2 : index
    %90 = vector.load %arg8[%c0_41, %c2_42] : memref<16x3xf32, #tpu.memory_space<vmem>>, vector<16x1xf32>
    %91 = vector.broadcast %90 : vector<16x1xf32> to vector<16x16xf32>
    %92 = arith.addf %89, %91 : vector<16x16xf32>
    %cst_43 = arith.constant 0.000000e+00 : f32
    %93 = vector.broadcast %cst_43 : f32 to vector<16x16xf32>
    %94 = arith.maximumf %92, %93 : vector<16x16xf32>
    %c0_44 = arith.constant 0 : index
    %c0_45 = arith.constant 0 : index
    %95 = vector.load %arg9[%c0_44, %c0_45] : memref<40x16xf32, #tpu.memory_space<vmem>>, vector<40x16xf32>
    %cst_46 = arith.constant dense<0.000000e+00> : vector<40x16xf32>
    %96 = tpu.matmul %95, %94, %cst_46 {dimension_numbers = #tpu.dot_dimension_numbers<[1], [0], [0], [1], [0, 0, 1, 1], [], []>} : vector<40x16xf32>, vector<16x16xf32>, vector<40x16xf32> -> vector<40x16xf32>
    %c0_47 = arith.constant 0 : index
    %c0_48 = arith.constant 0 : index
    %97 = vector.load %arg10[%c0_47, %c0_48] : memref<40x1xf32, #tpu.memory_space<vmem>>, vector<40x1xf32>
    %98 = vector.broadcast %97 : vector<40x1xf32> to vector<40x16xf32>
    %99 = arith.addf %96, %98 : vector<40x16xf32>
    %c0_49 = arith.constant 0 : index
    %c0_50 = arith.constant 0 : index
    %c0_51 = arith.constant 0 : index
    %100 = vector.load %arg11[%c0_49, %c0_50, %c0_51] : memref<1x40x16xf32, #tpu.memory_space<vmem>>, vector<1x40x16xf32>
    %101 = vector.shape_cast %100 : vector<1x40x16xf32> to vector<40x16xf32>
    %102 = vector.shape_cast %99 : vector<40x16xf32> to vector<1x40x16xf32>
    tpu.vector_store %arg11[%c0_49, %c0_50, %c0_51], %102 {strides = array<i32>} : memref<1x40x16xf32, #tpu.memory_space<vmem>>, vector<1x40x16xf32>,
    return
  }
  func.func @transform_0(%arg0: i32, %arg1: i32) -> (i32, i32, i32) {
    %c0_i32 = arith.constant 0 : i32
    %c0_i32_0 = arith.constant 0 : i32
    return %arg0, %c0_i32, %arg1 : i32, i32, i32
  }
  func.func @transform_1(%arg0: i32, %arg1: i32) -> (i32, i32) {
    %c0_i32 = arith.constant 0 : i32
    %c0_i32_0 = arith.constant 0 : i32
    %c0_i32_1 = arith.constant 0 : i32
    return %c0_i32, %c0_i32_0 : i32, i32
  }
  func.func @transform_2(%arg0: i32, %arg1: i32) -> (i32, i32) {
    %c0_i32 = arith.constant 0 : i32
    %c0_i32_0 = arith.constant 0 : i32
    %c0_i32_1 = arith.constant 0 : i32
    return %c0_i32, %c0_i32_0 : i32, i32
  }
  func.func @transform_3(%arg0: i32, %arg1: i32) -> (i32, i32) {
    %c0_i32 = arith.constant 0 : i32
    %c0_i32_0 = arith.constant 0 : i32
    %c0_i32_1 = arith.constant 0 : i32
    return %c0_i32, %c0_i32_0 : i32, i32
  }
  func.func @transform_4(%arg0: i32, %arg1: i32) -> (i32, i32) {
    %c0_i32 = arith.constant 0 : i32
    %c0_i32_0 = arith.constant 0 : i32
    %c0_i32_1 = arith.constant 0 : i32
    return %c0_i32, %c0_i32_0 : i32, i32
  }
  func.func @transform_5(%arg0: i32, %arg1: i32) -> (i32, i32) {
    %c0_i32 = arith.constant 0 : i32
    %c0_i32_0 = arith.constant 0 : i32
    %c0_i32_1 = arith.constant 0 : i32
    return %c0_i32, %c0_i32_0 : i32, i32
  }
  func.func @transform_6(%arg0: i32, %arg1: i32) -> (i32, i32) {
    %c0_i32 = arith.constant 0 : i32
    %c0_i32_0 = arith.constant 0 : i32
    %c0_i32_1 = arith.constant 0 : i32
    return %c0_i32, %c0_i32_0 : i32, i32
  }
  func.func @transform_7(%arg0: i32, %arg1: i32) -> (i32, i32) {
    %c0_i32 = arith.constant 0 : i32
    %c0_i32_0 = arith.constant 0 : i32
    %c0_i32_1 = arith.constant 0 : i32
    return %c0_i32, %c0_i32_0 : i32, i32
  }
  func.func @transform_8(%arg0: i32, %arg1: i32) -> (i32, i32) {
    %c0_i32 = arith.constant 0 : i32
    %c0_i32_0 = arith.constant 0 : i32
    %c0_i32_1 = arith.constant 0 : i32
    return %c0_i32, %c0_i32_0 : i32, i32
  }
  func.func @transform_9(%arg0: i32, %arg1: i32) -> (i32, i32, i32) {
    %c0_i32 = arith.constant 0 : i32
    %c0_i32_0 = arith.constant 0 : i32
    return %arg0, %c0_i32, %arg1 : i32, i32, i32
  }
}

</mosaic_0001>

<llo_original>
// kernel: tpu_custom_call.1
$region0: #{tpu_custom_call.1}
  #allocation0 [shape = 'u32[]', space=smem, size = 0x4, offset = 0x4, fixed_abs, tag = 'smem constant byte address 0x4 - core index']
  #allocation1 [shape = 'u32[144,128]{1,0:T(1,128)}', space=vmem, size = 0x12000, scoped, tag = 'internal scratch']
  %s0 = inlined_call_operand.vmem [shape: f32[2,32,16], index: 0, kind: input, shape index: {}]
  %s1 = inlined_call_operand.vmem [shape: f32[32,32], index: 1, kind: input, shape index: {}]
  %s2 = inlined_call_operand.vmem [shape: f32[32,3], index: 2, kind: input, shape index: {}]
  %s3 = inlined_call_operand.vmem [shape: f32[16,32], index: 3, kind: input, shape index: {}]
  %s4 = inlined_call_operand.vmem [shape: f32[16,3], index: 4, kind: input, shape index: {}]
  %s5 = inlined_call_operand.vmem [shape: f32[16,16], index: 5, kind: input, shape index: {}]
  %s6 = inlined_call_operand.vmem [shape: f32[16,3], index: 6, kind: input, shape index: {}]
  %s7 = inlined_call_operand.vmem [shape: f32[40,16], index: 7, kind: input, shape index: {}]
  %s8 = inlined_call_operand.vmem [shape: f32[40,1], index: 8, kind: input, shape index: {}]
  %s9 = inlined_call_operand.vmem [shape: f32[2,40,16], index: 9, kind: output, shape index: {}]
  %s10 = sld [smem:[#allocation0]]
  $region69: #{tpu_custom_call.1} parent=0
    _
  %s12 = ssub.s32 1, %s10
  %s13 = scalar_select 0, %s12, %s10
  loop: start=0, step=1, limit=4
  $region2: #{tpu_custom_call.1} parent=0 // loop_pre_header
    _
  $region3: #{tpu_custom_call.1} parent=0 // loop_header
    %s15 = sphi 0, %s19
    %p16 = scmp.ge.s32.totalorder %s15, 4
    %s22 = sphi 0, %s34
    %s23 = sphi 0, %s30
    %s24 = sphi 0, %s22
    %s25 = sphi 0, %s23
    %s26 = sphi 0, %s24
    %s27 = sphi 0, %s25
    %s39 = sphi 0, %s41
    %s42 = sphi 0, %s39
    %s43 = sphi 0, %s42
    %s59 = sphi 0, %s43
    %s63 = sphi 0, %s63
    %s65 = sphi 0, %s63
    %s66 = sphi 0, %s65
    %s80 = sphi 0, %s66
    %s84 = sphi 0, %s84
    %s86 = sphi 0, %s84
    %s87 = sphi 0, %s86
    %s101 = sphi 0, %s87
    %s105 = sphi 0, %s105
    %s107 = sphi 0, %s105
    %s108 = sphi 0, %s107
    %s122 = sphi 0, %s108
    %s126 = sphi 0, %s126
    %s128 = sphi 0, %s126
    %s129 = sphi 0, %s128
    %s143 = sphi 0, %s129
    %s147 = sphi 0, %s147
    %s149 = sphi 0, %s147
    %s150 = sphi 0, %s149
    %s164 = sphi 0, %s150
    %s168 = sphi 0, %s168
    %s170 = sphi 0, %s168
    %s171 = sphi 0, %s170
    %s185 = sphi 0, %s171
    %s189 = sphi 0, %s189
    %s191 = sphi 0, %s189
    %s192 = sphi 0, %s191
    %s206 = sphi 0, %s192
    %s210 = sphi 0, %s210
    %s212 = sphi 0, %s210
    %s213 = sphi 0, %s212
    %s227 = sphi 0, %s213
    %s235 = sphi 0, %s237
    %s238 = sphi 0, %s235
    %s239 = sphi 0, %s238
    %s255 = sphi 0, %s239
  $region4: #{tpu_custom_call.1} parent=0 // loop_header_branch
    %18 = sbr.rel (%p16) target = $region8
  $region5: #{tpu_custom_call.1} parent=0 // loop_body
    %s20 = ssub.s32 %s15, 1
    %s21 = ssub.s32 %s15, 2
    %s28 = sadd.s32 1, %s23
    %p29 = scmp.ge.s32.totalorder %s28, 1
    %s30 = scalar_select %p29, 0, %s28
    %s31 = sadd.s32 1, %s22
    %s32 = scalar_select %p29, %s31, %s22
    %p33 = scmp.ge.s32.totalorder %s32, 2
    %s34 = scalar_select %p33, 0, %s32
    %s35 = ssub.s32 %s22, %s34
    %s36 = ssub.s32 %s23, %s30
    %s37 = sor.u32 %s35, %s36
    %p38 = scmp.eq.s32.totalorder %s37, 0
    %s40 = sadd.s32 %s39, 1
    %s41 = scalar_select %p38, %s39, %s40
    %p44 = pneg %p38
    %p45 = scmp.eq.s32.totalorder %s15, 1
    %p46 = por %p44, %p45
    %p47 = scmp.ne.s32.totalorder %s39, %s42
    %p48 = scmp.eq.s32.totalorder %s15, 0
    %p49 = por %p47, %p48
    %p50 = scmp.ne.s32.totalorder %s39, %s42
    %p51 = scmp.eq.s32.totalorder %s20, 1
    %p52 = por %p50, %p51
    %p53 = scmp.ne.s32.totalorder %s42, %s43
    %p54 = scmp.eq.s32.totalorder %s20, 0
    %p55 = por %p53, %p54
    %p56 = scmp.ne.s32.totalorder %s42, %s43
    %p57 = scmp.eq.s32.totalorder %s21, 1
    %p58 = por %p56, %p57
    %p60 = scmp.ne.s32.totalorder %s43, %s59
    %p61 = scmp.eq.s32.totalorder %s21, 0
    %p62 = por %p60, %p61
    %s64 = sadd.s32 %s63, 1
    %p67 = scmp.eq.s32.totalorder %s15, 1
    %p68 = scmp.ne.s32.totalorder %s63, %s65
    %p69 = scmp.eq.s32.totalorder %s15, 0
    %p70 = por %p68, %p69
    %p71 = scmp.ne.s32.totalorder %s63, %s65
    %p72 = scmp.eq.s32.totalorder %s20, 1
    %p73 = por %p71, %p72
    %p74 = scmp.ne.s32.totalorder %s65, %s66
    %p75 = scmp.eq.s32.totalorder %s20, 0
    %p76 = por %p74, %p75
    %p77 = scmp.ne.s32.totalorder %s65, %s66
    %p78 = scmp.eq.s32.totalorder %s21, 1
    %p79 = por %p77, %p78
    %p81 = scmp.ne.s32.totalorder %s66, %s80
    %p82 = scmp.eq.s32.totalorder %s21, 0
    %p83 = por %p81, %p82
    %s85 = sadd.s32 %s84, 1
    %p88 = scmp.eq.s32.totalorder %s15, 1
    %p89 = scmp.ne.s32.totalorder %s84, %s86
    %p90 = scmp.eq.s32.totalorder %s15, 0
    %p91 = por %p89, %p90
    %p92 = scmp.ne.s32.totalorder %s84, %s86
    %p93 = scmp.eq.s32.totalorder %s20, 1
    %p94 = por %p92, %p93
    %p95 = scmp.ne.s32.totalorder %s86, %s87
    %p96 = scmp.eq.s32.totalorder %s20, 0
    %p97 = por %p95, %p96
    %p98 = scmp.ne.s32.totalorder %s86, %s87
    %p99 = scmp.eq.s32.totalorder %s21, 1
    %p100 = por %p98, %p99
    %p102 = scmp.ne.s32.totalorder %s87, %s101
    %p103 = scmp.eq.s32.totalorder %s21, 0
    %p104 = por %p102, %p103
    %s106 = sadd.s32 %s105, 1
    %p109 = scmp.eq.s32.totalorder %s15, 1
    %p110 = scmp.ne.s32.totalorder %s105, %s107
    %p111 = scmp.eq.s32.totalorder %s15, 0
    %p112 = por %p110, %p111
    %p113 = scmp.ne.s32.totalorder %s105, %s107
    %p114 = scmp.eq.s32.totalorder %s20, 1
    %p115 = por %p113, %p114
    %p116 = scmp.ne.s32.totalorder %s107, %s108
    %p117 = scmp.eq.s32.totalorder %s20, 0
    %p118 = por %p116, %p117
    %p119 = scmp.ne.s32.totalorder %s107, %s108
    %p120 = scmp.eq.s32.totalorder %s21, 1
    %p121 = por %p119, %p120
    %p123 = scmp.ne.s32.totalorder %s108, %s122
    %p124 = scmp.eq.s32.totalorder %s21, 0
    %p125 = por %p123, %p124
    %s127 = sadd.s32 %s126, 1
    %p130 = scmp.eq.s32.totalorder %s15, 1
    %p131 = scmp.ne.s32.totalorder %s126, %s128
    %p132 = scmp.eq.s32.totalorder %s15, 0
    %p133 = por %p131, %p132
    %p134 = scmp.ne.s32.totalorder %s126, %s128
    %p135 = scmp.eq.s32.totalorder %s20, 1
    %p136 = por %p134, %p135
    %p137 = scmp.ne.s32.totalorder %s128, %s129
    %p138 = scmp.eq.s32.totalorder %s20, 0
    %p139 = por %p137, %p138
    %p140 = scmp.ne.s32.totalorder %s128, %s129
    %p141 = scmp.eq.s32.totalorder %s21, 1
    %p142 = por %p140, %p141
    %p144 = scmp.ne.s32.totalorder %s129, %s143
    %p145 = scmp.eq.s32.totalorder %s21, 0
    %p146 = por %p144, %p145
    %s148 = sadd.s32 %s147, 1
    %p151 = scmp.eq.s32.totalorder %s15, 1
    %p152 = scmp.ne.s32.totalorder %s147, %s149
    %p153 = scmp.eq.s32.totalorder %s15, 0
    %p154 = por %p152, %p153
    %p155 = scmp.ne.s32.totalorder %s147, %s149
    %p156 = scmp.eq.s32.totalorder %s20, 1
    %p157 = por %p155, %p156
    %p158 = scmp.ne.s32.totalorder %s149, %s150
    %p159 = scmp.eq.s32.totalorder %s20, 0
    %p160 = por %p158, %p159
    %p161 = scmp.ne.s32.totalorder %s149, %s150
    %p162 = scmp.eq.s32.totalorder %s21, 1
    %p163 = por %p161, %p162
    %p165 = scmp.ne.s32.totalorder %s150, %s164
    %p166 = scmp.eq.s32.totalorder %s21, 0
    %p167 = por %p165, %p166
    %s169 = sadd.s32 %s168, 1
    %p172 = scmp.eq.s32.totalorder %s15, 1
    %p173 = scmp.ne.s32.totalorder %s168, %s170
    %p174 = scmp.eq.s32.totalorder %s15, 0
    %p175 = por %p173, %p174
    %p176 = scmp.ne.s32.totalorder %s168, %s170
    %p177 = scmp.eq.s32.totalorder %s20, 1
    %p178 = por %p176, %p177
    %p179 = scmp.ne.s32.totalorder %s170, %s171
    %p180 = scmp.eq.s32.totalorder %s20, 0
    %p181 = por %p179, %p180
    %p182 = scmp.ne.s32.totalorder %s170, %s171
    %p183 = scmp.eq.s32.totalorder %s21, 1
    %p184 = por %p182, %p183
    %p186 = scmp.ne.s32.totalorder %s171, %s185
    %p187 = scmp.eq.s32.totalorder %s21, 0
    %p188 = por %p186, %p187
    %s190 = sadd.s32 %s189, 1
    %p193 = scmp.eq.s32.totalorder %s15, 1
    %p194 = scmp.ne.s32.totalorder %s189, %s191
    %p195 = scmp.eq.s32.totalorder %s15, 0
    %p196 = por %p194, %p195
    %p197 = scmp.ne.s32.totalorder %s189, %s191
    %p198 = scmp.eq.s32.totalorder %s20, 1
    %p199 = por %p197, %p198
    %p200 = scmp.ne.s32.totalorder %s191, %s192
    %p201 = scmp.eq.s32.totalorder %s20, 0
    %p202 = por %p200, %p201
    %p203 = scmp.ne.s32.totalorder %s191, %s192
    %p204 = scmp.eq.s32.totalorder %s21, 1
    %p205 = por %p203, %p204
    %p207 = scmp.ne.s32.totalorder %s192, %s206
    %p208 = scmp.eq.s32.totalorder %s21, 0
    %p209 = por %p207, %p208
    %s211 = sadd.s32 %s210, 1
    %p214 = scmp.eq.s32.totalorder %s15, 1
    %p215 = scmp.ne.s32.totalorder %s210, %s212
    %p216 = scmp.eq.s32.totalorder %s15, 0
    %p217 = por %p215, %p216
    %p218 = scmp.ne.s32.totalorder %s210, %s212
    %p219 = scmp.eq.s32.totalorder %s20, 1
    %p220 = por %p218, %p219
    %p221 = scmp.ne.s32.totalorder %s212, %s213
    %p222 = scmp.eq.s32.totalorder %s20, 0
    %p223 = por %p221, %p222
    %p224 = scmp.ne.s32.totalorder %s212, %s213
    %p225 = scmp.eq.s32.totalorder %s21, 1
    %p226 = por %p224, %p225
    %p228 = scmp.ne.s32.totalorder %s213, %s227
    %p229 = scmp.eq.s32.totalorder %s21, 0
    %p230 = por %p228, %p229
    %s231 = ssub.s32 %s22, %s34
    %s232 = ssub.s32 %s23, %s30
    %s233 = sor.u32 %s231, %s232
    %p234 = scmp.eq.s32.totalorder %s233, 0
    %s236 = sadd.s32 %s235, 1
    %s237 = scalar_select %p234, %s235, %s236
    %p240 = pneg %p234
    %p241 = scmp.eq.s32.totalorder %s15, 1
    %p242 = por %p240, %p241
    %p243 = scmp.ne.s32.totalorder %s235, %s238
    %p244 = scmp.eq.s32.totalorder %s15, 0
    %p245 = por %p243, %p244
    %p246 = scmp.ne.s32.totalorder %s235, %s238
    %p247 = scmp.eq.s32.totalorder %s20, 1
    %p248 = por %p246, %p247
    %p249 = scmp.ne.s32.totalorder %s238, %s239
    %p250 = scmp.eq.s32.totalorder %s20, 0
    %p251 = por %p249, %p250
    %p252 = scmp.ne.s32.totalorder %s238, %s239
    %p253 = scmp.eq.s32.totalorder %s21, 1
    %p254 = por %p252, %p253
    %p256 = scmp.ne.s32.totalorder %s239, %s255
    %p257 = scmp.eq.s32.totalorder %s21, 0
    %p258 = por %p256, %p257
    %p259 = scmp.le.s32.totalorder 1, %s15
    %p260 = scmp.lt.s32.totalorder %s15, 3
    %p261 = pnand %p259, %p260
    %p262 = pneg %p261
    // Predicated region
    $region9: #{tpu_custom_call.1} parent=5 // pred_check
      _
    $region10: #{tpu_custom_call.1} parent=5 // pred_check_branch
      %264 = sbr.rel (%p261) target = $region12
    $region11: #{tpu_custom_call.1} parent=5 // pred_region
      %s265 = ssub.s32 %s15, 1
      // Predicated region
      $region13: #{tpu_custom_call.1} parent=11 // pred_check
        %p266 = pneg %p76
      $region14: #{tpu_custom_call.1} parent=11 // pred_check_branch
        %268 = sbr.rel (%p266) target = $region16
      $region15: #{tpu_custom_call.1} parent=11 // pred_region
        _
      $region16: #{tpu_custom_call.1} parent=11 // pred_fallthru
        _
      // Predicated region
      $region17: #{tpu_custom_call.1} parent=11 // pred_check
        %p269 = pneg %p97
      $region18: #{tpu_custom_call.1} parent=11 // pred_check_branch
        %271 = sbr.rel (%p269) target = $region20
      $region19: #{tpu_custom_call.1} parent=11 // pred_region
        _
      $region20: #{tpu_custom_call.1} parent=11 // pred_fallthru
        _
      // Predicated region
      $region21: #{tpu_custom_call.1} parent=11 // pred_check
        %p272 = pneg %p118
      $region22: #{tpu_custom_call.1} parent=11 // pred_check_branch
        %274 = sbr.rel (%p272) target = $region24
      $region23: #{tpu_custom_call.1} parent=11 // pred_region
        _
      $region24: #{tpu_custom_call.1} parent=11 // pred_fallthru
        _
      // Predicated region
      $region25: #{tpu_custom_call.1} parent=11 // pred_check
        %p275 = pneg %p139
      $region26: #{tpu_custom_call.1} parent=11 // pred_check_branch
        %277 = sbr.rel (%p275) target = $region28
      $region27: #{tpu_custom_call.1} parent=11 // pred_region
        _
      $region28: #{tpu_custom_call.1} parent=11 // pred_fallthru
        _
      // Predicated region
      $region29: #{tpu_custom_call.1} parent=11 // pred_check
        %p278 = pneg %p160
      $region30: #{tpu_custom_call.1} parent=11 // pred_check_branch
        %280 = sbr.rel (%p278) target = $region32
      $region31: #{tpu_custom_call.1} parent=11 // pred_region
        _
      $region32: #{tpu_custom_call.1} parent=11 // pred_fallthru
        _
      // Predicated region
      $region33: #{tpu_custom_call.1} parent=11 // pred_check
        %p281 = pneg %p181
      $region34: #{tpu_custom_call.1} parent=11 // pred_check_branch
        %283 = sbr.rel (%p281) target = $region36
      $region35: #{tpu_custom_call.1} parent=11 // pred_region
        _
      $region36: #{tpu_custom_call.1} parent=11 // pred_fallthru
        _
      // Predicated region
      $region37: #{tpu_custom_call.1} parent=11 // pred_check
        %p284 = pneg %p202
      $region38: #{tpu_custom_call.1} parent=11 // pred_check_branch
        %286 = sbr.rel (%p284) target = $region40
      $region39: #{tpu_custom_call.1} parent=11 // pred_region
        _
      $region40: #{tpu_custom_call.1} parent=11 // pred_fallthru
        _
      // Predicated region
      $region41: #{tpu_custom_call.1} parent=11 // pred_check
        %p287 = pneg %p223
      $region42: #{tpu_custom_call.1} parent=11 // pred_check_branch
        %289 = sbr.rel (%p287) target = $region44
      $region43: #{tpu_custom_call.1} parent=11 // pred_region
        _
      $region44: #{tpu_custom_call.1} parent=11 // pred_fallthru
        _
    $region12: #{tpu_custom_call.1} parent=5 // pred_fallthru
      _
    %p290 = scmp.lt.s32.totalorder %s15, 2
    // Predicated region
    $region45: #{tpu_custom_call.1} parent=5 // pred_check
      %p291 = pneg %p290
    $region46: #{tpu_custom_call.1} parent=5 // pred_check_branch
      %293 = sbr.rel (%p291) target = $region48
    $region47: #{tpu_custom_call.1} parent=5 // pred_region
      // Predicated region
      $region49: #{tpu_custom_call.1} parent=47 // pred_check
        %p294 = pneg %p49
      $region50: #{tpu_custom_call.1} parent=47 // pred_check_branch
        %296 = sbr.rel (%p294) target = $region52
      $region51: #{tpu_custom_call.1} parent=47 // pred_region
        %p297 = scmp.lt.s32.totalorder %s22, 1
        %s298 = scalar_select %p297, %s22, 1
        %p299 = scmp.lt.s32.totalorder %s23, 0
        %s300 = scalar_select %p299, %s23, 0
        %s301 = smul.addr %s298, 4
        %s302 = sadd.s32 %s300, %s301
        %s303 = smul.addr %s302, 8
        %s304 = scalar_lea.vmem %s0, %s303
      $region52: #{tpu_custom_call.1} parent=47 // pred_fallthru
        _
    $region48: #{tpu_custom_call.1} parent=5 // pred_fallthru
      _
    %p305 = scmp.le.s32.totalorder 1, %s15
    %p306 = scmp.lt.s32.totalorder %s15, 3
    %p307 = pnand %p305, %p306
    %p308 = pneg %p307
    // Predicated region
    $region53: #{tpu_custom_call.1} parent=5 // pred_check
      _
    $region54: #{tpu_custom_call.1} parent=5 // pred_check_branch
      %310 = sbr.rel (%p307) target = $region56
    $region55: #{tpu_custom_call.1} parent=5 // pred_region
      %s311 = ssub.s32 %s15, 1
      %p312 = scmp.lt.s32.totalorder %s24, 1
      %s313 = scalar_select %p312, %s24, 1
      %p314 = scmp.lt.s32.totalorder %s25, 0
      %s315 = scalar_select %p314, %s25, 0
      %s316 = smul.addr %s313, 4
      %s317 = sadd.s32 %s315, %s316
      %s318 = smul.addr %s317, 8
      %s319 = scalar_lea.vmem %s0, %s318
      %p320 = pneg %p55
      %p321 = pneg %p52
      %p322 = pneg %p76
      %p323 = pneg %p73
      %p324 = pneg %p97
      %p325 = pneg %p94
      %p326 = pneg %p118
      %p327 = pneg %p115
      %p328 = pneg %p139
      %p329 = pneg %p136
      %p330 = pneg %p160
      %p331 = pneg %p157
      %p332 = pneg %p181
      %p333 = pneg %p178
      %p334 = pneg %p202
      %p335 = pneg %p199
      %p336 = pneg %p223
      %p337 = pneg %p220
      %p338 = pneg %p251
      %p339 = pneg %p248
      %p340 = scmp.lt.s32.totalorder %s24, 1
      %s341 = scalar_select %p340, %s24, 1
      %p342 = scmp.lt.s32.totalorder %s25, 0
      %s343 = scalar_select %p342, %s25, 0
      %s344 = smul.addr %s341, 5
      %s345 = sadd.s32 %s343, %s344
      %s346 = smul.addr %s345, 8
      %s347 = scalar_lea.vmem %s9, %s346
      %p348 = scmp.lt.s32.totalorder %s24, 1
      %s349 = scalar_select %p348, %s24, 1
      %p350 = scmp.lt.s32.totalorder %s25, 0
      %s351 = scalar_select %p350, %s25, 0
      %s352 = smul.addr %s349, 4
      %s353 = sadd.s32 %s351, %s352
      %s354 = smul.addr %s353, 8
      %s355 = scalar_lea.vmem %s0, %s354
      %p356 = scmp.lt.s32.totalorder %s24, 1
      %s357 = scalar_select %p356, %s24, 1
      %p358 = scmp.lt.s32.totalorder %s25, 0
      %s359 = scalar_select %p358, %s25, 0
      %s360 = smul.addr %s357, 5
      %s361 = sadd.s32 %s359, %s360
      %s362 = smul.addr %s361, 8
      %s363 = scalar_lea.vmem %s9, %s362
      %v364 = vld [vmem:[%s355] sm:$0xff]
      %v365 = vld [vmem:[%s355 + $0x8] sm:$0xff]
      %v366 = vld [vmem:[%s355 + $0x10] sm:$0xff]
      %v367 = vld [vmem:[%s355 + $0x18] sm:$0xff]
      %v368 = vld [vmem:[%s1] sm:$0xff]
      %v369 = vld [vmem:[%s1 + $0x8] sm:$0xff]
      %v370 = vld [vmem:[%s1 + $0x10] sm:$0xff]
      %v371 = vld [vmem:[%s1 + $0x18] sm:$0xff]
      %v372 = vld [vmem:[%s2] sm:$0xff]
      %v373 = vld [vmem:[%s2 + $0x8] sm:$0xff]
      %v374 = vld [vmem:[%s2 + $0x10] sm:$0xff]
      %v375 = vld [vmem:[%s2 + $0x18] sm:$0xff]
      %377 = vset.pattern.permute.xlu0 0
      %378 = vperm.xlu0 %377, %v372
      %v379 = vpop.permute.xlu0 %378
      %382 = vset.pattern.permute.xlu0 0
      %383 = vperm.xlu0 %382, %v373
      %v384 = vpop.permute.xlu0 %383
      %387 = vset.pattern.permute.xlu0 0
      %388 = vperm.xlu0 %387, %v374
      %v389 = vpop.permute.xlu0 %388
      %392 = vset.pattern.permute.xlu0 0
      %393 = vperm.xlu0 %392, %v375
      %v394 = vpop.permute.xlu0 %393
      %vm396 = vcmask 261120
      %v398 = vsel %vm396, %v368, 0
      %v401 = vsel %vm396, %v369, 0
      %v404 = vsel %vm396, %v370, 0
      %v407 = vsel %vm396, %v371, 0
      %409 = vmatprep.subr.mxu0 0.0
      %410 = vmatpush1.msra.mxu0 %v364
      %411 = vmatprep.subr.mxu0 0.0
      %412 = vmatpush1.msra.mxu0 %v365
      %413 = vmatprep.subr.mxu0 0.0
      %414 = vmatpush1.msra.mxu0 %v366
      %415 = vmatprep.subr.mxu0 0.0
      %416 = vmatpush1.msra.mxu0 %v367
      %417 = vmatprep.subr.mxu0 0.0
      %418 = vmatpush1.msra.mxu0 0.0
      %419 = vmatprep.subr.mxu0 0.0
      %420 = vmatpush1.msra.mxu0 0.0
      %421 = vmatprep.subr.mxu0 0.0
      %422 = vmatpush1.msra.mxu0 0.0
      %423 = vmatprep.subr.mxu0 0.0
      %424 = vmatpush1.msra.mxu0 0.0
      %425 = vmatprep.subr.mxu0 0.0
      %426 = vmatpush1.msra.mxu0 0.0
      %427 = vmatprep.subr.mxu0 0.0
      %428 = vmatpush1.msra.mxu0 0.0
      %429 = vmatprep.subr.mxu0 0.0
      %430 = vmatpush1.msra.mxu0 0.0
      %431 = vmatprep.subr.mxu0 0.0
      %432 = vmatpush1.msra.mxu0 0.0
      %433 = vmatprep.subr.mxu0 0.0
      %434 = vmatpush1.msra.mxu0 0.0
      %435 = vmatprep.subr.mxu0 0.0
      %436 = vmatpush1.msra.mxu0 0.0
      %437 = vmatprep.subr.mxu0 0.0
      %438 = vmatpush1.msra.mxu0 0.0
      %439 = vmatprep.subr.mxu0 0.0
      %440 = vmatpush1.msra.mxu0 0.0
      %441 = vmatprep.subr.mxu0 0.0
      %442 = vmatpush1.msra.mxu0 0.0
      %443 = vmatprep.subr.mxu0 0.0
      %444 = vmatpush1.msra.mxu0 0.0
      %445 = vmatprep.subr.mxu0 0.0
      %446 = vmatpush1.msra.mxu0 0.0
      %447 = vmatprep.subr.mxu0 0.0
      %448 = vmatpush1.msra.mxu0 0.0
      %449 = vmatprep.subr.mxu0 0.0
      %450 = vmatpush1.msra.mxu0 0.0
      %451 = vmatprep.subr.mxu0 0.0
      %452 = vmatpush1.msra.mxu0 0.0
      %453 = vmatprep.subr.mxu0 0.0
      %454 = vmatpush1.msra.mxu0 0.0
      %455 = vmatprep.subr.mxu0 0.0
      %456 = vmatpush1.msra.mxu0 0.0
      %457 = vmatprep.subr.mxu0 0.0
      %458 = vmatpush1.msra.mxu0 0.0
      %459 = vmatprep.subr.mxu0 0.0
      %460 = vmatpush1.msra.mxu0 0.0
      %461 = vmatprep.subr.mxu0 0.0
      %462 = vmatpush1.msra.mxu0 0.0
      %463 = vmatprep.subr.mxu0 0.0
      %464 = vmatpush1.msra.mxu0 0.0
      %465 = vmatprep.subr.mxu0 0.0
      %466 = vmatpush1.msra.mxu0 0.0
      %467 = vmatprep.subr.mxu0 0.0
      %468 = vmatpush1.msra.mxu0 0.0
      %469 = vmatprep.subr.mxu0 0.0
      %470 = vmatpush1.msra.mxu0 0.0
      %471 = vmatprep.subr.mxu0 0.0
      %472 = vmatpush1.msra.mxu0 0.0
      %473 = vmatprep.mubr.f32.mxu0 0.0
      %474 = vmatmul.mubr.f32.gmra.mrb[0].mxu0 %v398
      %v475 = vpop.f32.mrb[0].mxu0
      %v476 = vadd.f32 %v379, %v475
      %v477 = vpop.f32.mrb[0].mxu0
      %478 = vmatprep.mubr.f32.mxu0 0.0
      %479 = vmatmul.mubr.f32.gmra.mrb[0].mxu0 %v401
      %v480 = vpop.f32.mrb[0].mxu0
      %v481 = vadd.f32 %v384, %v480
      %v482 = vpop.f32.mrb[0].mxu0
      %483 = vmatprep.mubr.f32.mxu0 0.0
      %484 = vmatmul.mubr.f32.gmra.mrb[0].mxu0 %v404
      %v485 = vpop.f32.mrb[0].mxu0
      %v486 = vadd.f32 %v389, %v485
      %v487 = vpop.f32.mrb[0].mxu0
      %488 = vmatprep.mubr.f32.mxu0 0.0
      %489 = vmatmul.mubr.f32.gmra.mrb[0].mxu0 %v407
      %v490 = vpop.f32.mrb[0].mxu0
      %v491 = vadd.f32 %v394, %v490
      %v492 = vpop.f32.mrb[0].mxu0
      %493 = vdwg.mxu0
      %vm494 = vcmask 130048
      %v495 = vsel %vm494, %v476, 0.0
      %v496 = vsel %vm494, %v481, 0.0
      %v497 = vadd.f32 %v495, %v496
      %v498 = vsel %vm494, %v486, 0.0
      %v499 = vadd.f32 %v497, %v498
      %v500 = vsel %vm494, %v491, 0.0
      %v501 = vadd.f32 %v499, %v500
      %v502 = vrot.slane %v501, 4
      %v503 = vadd.f32 %v501, %v502
      %v504 = vrot.slane %v503, 2
      %v505 = vadd.f32 %v503, %v504
      %v506 = vrot.slane %v505, 1
      %v507 = vadd.f32 %v505, %v506
      %v508 = vmul.f32 %v507, 0.03125
      %v509 = vmul.f32 %v476, %v476
      %v510 = vmul.f32 %v481, %v481
      %v511 = vmul.f32 %v486, %v486
      %v512 = vmul.f32 %v491, %v491
      %v513 = vsel %vm494, %v509, 0.0
      %v514 = vsel %vm494, %v510, 0.0
      %v515 = vadd.f32 %v513, %v514
      %v516 = vsel %vm494, %v511, 0.0
      %v517 = vadd.f32 %v515, %v516
      %v518 = vsel %vm494, %v512, 0.0
      %v519 = vadd.f32 %v517, %v518
      %v520 = vrot.slane %v519, 4
      %v521 = vadd.f32 %v519, %v520
      %v522 = vrot.slane %v521, 2
      %v523 = vadd.f32 %v521, %v522
      %v524 = vrot.slane %v523, 1
      %v525 = vadd.f32 %v523, %v524
      %v526 = vmul.f32 %v525, 0.03125
      %v527 = vmul.f32 %v508, %v508
      %v528 = vsub.f32 %v526, %v527
      %v529 = vsub.f32 %v476, %v508
      %v530 = vsub.f32 %v481, %v508
      %v531 = vsub.f32 %v486, %v508
      %v532 = vsub.f32 %v491, %v508
      %v533 = vadd.f32 %v528, 1e-05
      %v534 = vrsqrt.pop %v533
      %v535 = vmul.f32 %v529, %v534
      %v536 = vmul.f32 %v530, %v534
      %v537 = vmul.f32 %v531, %v534
      %v538 = vmul.f32 %v532, %v534
      %539 = vset.pattern.permute.xlu0 1
      %540 = vperm.xlu0 %539, %v372
      %v541 = vpop.permute.xlu0 %540
      %543 = vset.pattern.permute.xlu0 1
      %544 = vperm.xlu0 %543, %v373
      %v545 = vpop.permute.xlu0 %544
      %547 = vset.pattern.permute.xlu0 1
      %548 = vperm.xlu0 %547, %v374
      %v549 = vpop.permute.xlu0 %548
      %551 = vset.pattern.permute.xlu0 1
      %552 = vperm.xlu0 %551, %v375
      %v553 = vpop.permute.xlu0 %552
      %v555 = vmul.f32 %v535, %v541
      %v556 = vmul.f32 %v536, %v545
      %v557 = vmul.f32 %v537, %v549
      %v558 = vmul.f32 %v538, %v553
      %559 = vset.pattern.permute.xlu0 2
      %560 = vperm.xlu0 %559, %v372
      %v561 = vpop.permute.xlu0 %560
      %563 = vset.pattern.permute.xlu0 2
      %564 = vperm.xlu0 %563, %v373
      %v565 = vpop.permute.xlu0 %564
      %567 = vset.pattern.permute.xlu0 2
      %568 = vperm.xlu0 %567, %v374
      %v569 = vpop.permute.xlu0 %568
      %571 = vset.pattern.permute.xlu0 2
      %572 = vperm.xlu0 %571, %v375
      %v573 = vpop.permute.xlu0 %572
      %v575 = vadd.f32 %v555, %v561
      %v576 = vadd.f32 %v556, %v565
      %v577 = vadd.f32 %v557, %v569
      %v578 = vadd.f32 %v558, %v573
      %v579 = vmax.f32 %v575, 0.0
      %v580 = vmax.f32 %v576, 0.0
      %v581 = vmax.f32 %v577, 0.0
      %v582 = vmax.f32 %v578, 0.0
      %v583 = vld [vmem:[%s3] sm:$0xff]
      %v584 = vld [vmem:[%s3 + $0x8] sm:$0xff]
      %v585 = vld [vmem:[%s4] sm:$0xff]
      %v586 = vld [vmem:[%s4 + $0x8] sm:$0xff]
      %588 = vset.pattern.permute.xlu0 0
      %589 = vperm.xlu0 %588, %v585
      %v590 = vpop.permute.xlu0 %589
      %593 = vset.pattern.permute.xlu0 0
      %594 = vperm.xlu0 %593, %v586
      %v595 = vpop.permute.xlu0 %594
      %v598 = vsel %vm396, %v583, 0
      %v601 = vsel %vm396, %v584, 0
      %603 = vmatprep.subr.mxu0 0.0
      %604 = vmatpush1.msra.mxu0 %v579
      %605 = vmatprep.subr.mxu0 0.0
      %606 = vmatpush1.msra.mxu0 %v580
      %607 = vmatprep.subr.mxu0 0.0
      %608 = vmatpush1.msra.mxu0 %v581
      %609 = vmatprep.subr.mxu0 0.0
      %610 = vmatpush1.msra.mxu0 %v582
      %611 = vmatprep.subr.mxu0 0.0
      %612 = vmatpush1.msra.mxu0 0.0
      %613 = vmatprep.subr.mxu0 0.0
      %614 = vmatpush1.msra.mxu0 0.0
      %615 = vmatprep.subr.mxu0 0.0
      %616 = vmatpush1.msra.mxu0 0.0
      %617 = vmatprep.subr.mxu0 0.0
      %618 = vmatpush1.msra.mxu0 0.0
      %619 = vmatprep.subr.mxu0 0.0
      %620 = vmatpush1.msra.mxu0 0.0
      %621 = vmatprep.subr.mxu0 0.0
      %622 = vmatpush1.msra.mxu0 0.0
      %623 = vmatprep.subr.mxu0 0.0
      %624 = vmatpush1.msra.mxu0 0.0
      %625 = vmatprep.subr.mxu0 0.0
      %626 = vmatpush1.msra.mxu0 0.0
      %627 = vmatprep.subr.mxu0 0.0
      %628 = vmatpush1.msra.mxu0 0.0
      %629 = vmatprep.subr.mxu0 0.0
      %630 = vmatpush1.msra.mxu0 0.0
      %631 = vmatprep.subr.mxu0 0.0
      %632 = vmatpush1.msra.mxu0 0.0
      %633 = vmatprep.subr.mxu0 0.0
      %634 = vmatpush1.msra.mxu0 0.0
      %635 = vmatprep.subr.mxu0 0.0
      %636 = vmatpush1.msra.mxu0 0.0
      %637 = vmatprep.subr.mxu0 0.0
      %638 = vmatpush1.msra.mxu0 0.0
      %639 = vmatprep.subr.mxu0 0.0
      %640 = vmatpush1.msra.mxu0 0.0
      %641 = vmatprep.subr.mxu0 0.0
      %642 = vmatpush1.msra.mxu0 0.0
      %643 = vmatprep.subr.mxu0 0.0
      %644 = vmatpush1.msra.mxu0 0.0
      %645 = vmatprep.subr.mxu0 0.0
      %646 = vmatpush1.msra.mxu0 0.0
      %647 = vmatprep.subr.mxu0 0.0
      %648 = vmatpush1.msra.mxu0 0.0
      %649 = vmatprep.subr.mxu0 0.0
      %650 = vmatpush1.msra.mxu0 0.0
      %651 = vmatprep.subr.mxu0 0.0
      %652 = vmatpush1.msra.mxu0 0.0
      %653 = vmatprep.subr.mxu0 0.0
      %654 = vmatpush1.msra.mxu0 0.0
      %655 = vmatprep.subr.mxu0 0.0
      %656 = vmatpush1.msra.mxu0 0.0
      %657 = vmatprep.subr.mxu0 0.0
      %658 = vmatpush1.msra.mxu0 0.0
      %659 = vmatprep.subr.mxu0 0.0
      %660 = vmatpush1.msra.mxu0 0.0
      %661 = vmatprep.subr.mxu0 0.0
      %662 = vmatpush1.msra.mxu0 0.0
      %663 = vmatprep.subr.mxu0 0.0
      %664 = vmatpush1.msra.mxu0 0.0
      %665 = vmatprep.subr.mxu0 0.0
      %666 = vmatpush1.msra.mxu0 0.0
      %667 = vmatprep.mubr.f32.mxu0 0.0
      %668 = vmatmul.mubr.f32.gmra.mrb[0].mxu0 %v598
      %v669 = vpop.f32.mrb[0].mxu0
      %v670 = vadd.f32 %v590, %v669
      %v671 = vpop.f32.mrb[0].mxu0
      %672 = vmatprep.mubr.f32.mxu0 0.0
      %673 = vmatmul.mubr.f32.gmra.mrb[0].mxu0 %v601
      %v674 = vpop.f32.mrb[0].mxu0
      %v675 = vadd.f32 %v595, %v674
      %v676 = vpop.f32.mrb[0].mxu0
      %677 = vdwg.mxu0
      %v678 = vsel %vm494, %v670, 0.0
      %v679 = vsel %vm494, %v675, 0.0
      %v680 = vadd.f32 %v678, %v679
      %v681 = vrot.slane %v680, 4
      %v682 = vadd.f32 %v680, %v681
      %v683 = vrot.slane %v682, 2
      %v684 = vadd.f32 %v682, %v683
      %v685 = vrot.slane %v684, 1
      %v686 = vadd.f32 %v684, %v685
      %v687 = vmul.f32 %v686, 0.0625
      %v688 = vmul.f32 %v670, %v670
      %v689 = vmul.f32 %v675, %v675
      %v690 = vsel %vm494, %v688, 0.0
      %v691 = vsel %vm494, %v689, 0.0
      %v692 = vadd.f32 %v690, %v691
      %v693 = vrot.slane %v692, 4
      %v694 = vadd.f32 %v692, %v693
      %v695 = vrot.slane %v694, 2
      %v696 = vadd.f32 %v694, %v695
      %v697 = vrot.slane %v696, 1
      %v698 = vadd.f32 %v696, %v697
      %v699 = vmul.f32 %v698, 0.0625
      %v700 = vmul.f32 %v687, %v687
      %v701 = vsub.f32 %v699, %v700
      %v702 = vsub.f32 %v670, %v687
      %v703 = vsub.f32 %v675, %v687
      %v704 = vadd.f32 %v701, 1e-05
      %v705 = vrsqrt.pop %v704
      %v706 = vmul.f32 %v702, %v705
      %v707 = vmul.f32 %v703, %v705
      %708 = vset.pattern.permute.xlu0 1
      %709 = vperm.xlu0 %708, %v585
      %v710 = vpop.permute.xlu0 %709
      %712 = vset.pattern.permute.xlu0 1
      %713 = vperm.xlu0 %712, %v586
      %v714 = vpop.permute.xlu0 %713
      %v716 = vmul.f32 %v706, %v710
      %v717 = vmul.f32 %v707, %v714
      %718 = vset.pattern.permute.xlu0 2
      %719 = vperm.xlu0 %718, %v585
      %v720 = vpop.permute.xlu0 %719
      %722 = vset.pattern.permute.xlu0 2
      %723 = vperm.xlu0 %722, %v586
      %v724 = vpop.permute.xlu0 %723
      %v726 = vadd.f32 %v716, %v720
      %v727 = vadd.f32 %v717, %v724
      %v728 = vmax.f32 %v726, 0.0
      %v729 = vmax.f32 %v727, 0.0
      %v730 = vld [vmem:[%s5] sm:$0xff]
      %v731 = vld [vmem:[%s5 + $0x8] sm:$0xff]
      %v732 = vld [vmem:[%s6] sm:$0xff]
      %v733 = vld [vmem:[%s6 + $0x8] sm:$0xff]
      %735 = vset.pattern.permute.xlu0 0
      %736 = vperm.xlu0 %735, %v732
      %v737 = vpop.permute.xlu0 %736
      %740 = vset.pattern.permute.xlu0 0
      %741 = vperm.xlu0 %740, %v733
      %v742 = vpop.permute.xlu0 %741
      %v745 = vsel %vm494, %v730, 0
      %v748 = vsel %vm494, %v731, 0
      %750 = vmatprep.subr.mxu0 0.0
      %751 = vmatpush1.msra.mxu0 %v728
      %752 = vmatprep.subr.mxu0 0.0
      %753 = vmatpush1.msra.mxu0 %v729
      %754 = vmatprep.subr.mxu0 0.0
      %755 = vmatpush1.msra.mxu0 0.0
      %756 = vmatprep.subr.mxu0 0.0
      %757 = vmatpush1.msra.mxu0 0.0
      %758 = vmatprep.subr.mxu0 0.0
      %759 = vmatpush1.msra.mxu0 0.0
      %760 = vmatprep.subr.mxu0 0.0
      %761 = vmatpush1.msra.mxu0 0.0
      %762 = vmatprep.subr.mxu0 0.0
      %763 = vmatpush1.msra.mxu0 0.0
      %764 = vmatprep.subr.mxu0 0.0
      %765 = vmatpush1.msra.mxu0 0.0
      %766 = vmatprep.subr.mxu0 0.0
      %767 = vmatpush1.msra.mxu0 0.0
      %768 = vmatprep.subr.mxu0 0.0
      %769 = vmatpush1.msra.mxu0 0.0
      %770 = vmatprep.subr.mxu0 0.0
      %771 = vmatpush1.msra.mxu0 0.0
      %772 = vmatprep.subr.mxu0 0.0
      %773 = vmatpush1.msra.mxu0 0.0
      %774 = vmatprep.subr.mxu0 0.0
      %775 = vmatpush1.msra.mxu0 0.0
      %776 = vmatprep.subr.mxu0 0.0
      %777 = vmatpush1.msra.mxu0 0.0
      %778 = vmatprep.subr.mxu0 0.0
      %779 = vmatpush1.msra.mxu0 0.0
      %780 = vmatprep.subr.mxu0 0.0
      %781 = vmatpush1.msra.mxu0 0.0
      %782 = vmatprep.subr.mxu0 0.0
      %783 = vmatpush1.msra.mxu0 0.0
      %784 = vmatprep.subr.mxu0 0.0
      %785 = vmatpush1.msra.mxu0 0.0
      %786 = vmatprep.subr.mxu0 0.0
      %787 = vmatpush1.msra.mxu0 0.0
      %788 = vmatprep.subr.mxu0 0.0
      %789 = vmatpush1.msra.mxu0 0.0
      %790 = vmatprep.subr.mxu0 0.0
      %791 = vmatpush1.msra.mxu0 0.0
      %792 = vmatprep.subr.mxu0 0.0
      %793 = vmatpush1.msra.mxu0 0.0
      %794 = vmatprep.subr.mxu0 0.0
      %795 = vmatpush1.msra.mxu0 0.0
      %796 = vmatprep.subr.mxu0 0.0
      %797 = vmatpush1.msra.mxu0 0.0
      %798 = vmatprep.subr.mxu0 0.0
      %799 = vmatpush1.msra.mxu0 0.0
      %800 = vmatprep.subr.mxu0 0.0
      %801 = vmatpush1.msra.mxu0 0.0
      %802 = vmatprep.subr.mxu0 0.0
      %803 = vmatpush1.msra.mxu0 0.0
      %804 = vmatprep.subr.mxu0 0.0
      %805 = vmatpush1.msra.mxu0 0.0
      %806 = vmatprep.subr.mxu0 0.0
      %807 = vmatpush1.msra.mxu0 0.0
      %808 = vmatprep.subr.mxu0 0.0
      %809 = vmatpush1.msra.mxu0 0.0
      %810 = vmatprep.subr.mxu0 0.0
      %811 = vmatpush1.msra.mxu0 0.0
      %812 = vmatprep.subr.mxu0 0.0
      %813 = vmatpush1.msra.mxu0 0.0
      %814 = vmatprep.mubr.f32.mxu0 0.0
      %815 = vmatmul.mubr.f32.gmra.mrb[0].mxu0 %v745
      %v816 = vpop.f32.mrb[0].mxu0
      %v817 = vadd.f32 %v737, %v816
      %v818 = vpop.f32.mrb[0].mxu0
      %819 = vmatprep.mubr.f32.mxu0 0.0
      %820 = vmatmul.mubr.f32.gmra.mrb[0].mxu0 %v748
      %v821 = vpop.f32.mrb[0].mxu0
      %v822 = vadd.f32 %v742, %v821
      %v823 = vpop.f32.mrb[0].mxu0
      %824 = vdwg.mxu0
      %v825 = vsel %vm494, %v817, 0.0
      %v826 = vsel %vm494, %v822, 0.0
      %v827 = vadd.f32 %v825, %v826
      %v828 = vrot.slane %v827, 4
      %v829 = vadd.f32 %v827, %v828
      %v830 = vrot.slane %v829, 2
      %v831 = vadd.f32 %v829, %v830
      %v832 = vrot.slane %v831, 1
      %v833 = vadd.f32 %v831, %v832
      %v834 = vmul.f32 %v833, 0.0625
      %v835 = vmul.f32 %v817, %v817
      %v836 = vmul.f32 %v822, %v822
      %v837 = vsel %vm494, %v835, 0.0
      %v838 = vsel %vm494, %v836, 0.0
      %v839 = vadd.f32 %v837, %v838
      %v840 = vrot.slane %v839, 4
      %v841 = vadd.f32 %v839, %v840
      %v842 = vrot.slane %v841, 2
      %v843 = vadd.f32 %v841, %v842
      %v844 = vrot.slane %v843, 1
      %v845 = vadd.f32 %v843, %v844
      %v846 = vmul.f32 %v845, 0.0625
      %v847 = vmul.f32 %v834, %v834
      %v848 = vsub.f32 %v846, %v847
      %v849 = vsub.f32 %v817, %v834
      %v850 = vsub.f32 %v822, %v834
      %v851 = vadd.f32 %v848, 1e-05
      %v852 = vrsqrt.pop %v851
      %v853 = vmul.f32 %v849, %v852
      %v854 = vmul.f32 %v850, %v852
      %855 = vset.pattern.permute.xlu0 1
      %856 = vperm.xlu0 %855, %v732
      %v857 = vpop.permute.xlu0 %856
      %859 = vset.pattern.permute.xlu0 1
      %860 = vperm.xlu0 %859, %v733
      %v861 = vpop.permute.xlu0 %860
      %v863 = vmul.f32 %v853, %v857
      %v864 = vmul.f32 %v854, %v861
      %865 = vset.pattern.permute.xlu0 2
      %866 = vperm.xlu0 %865, %v732
      %v867 = vpop.permute.xlu0 %866
      %869 = vset.pattern.permute.xlu0 2
      %870 = vperm.xlu0 %869, %v733
      %v871 = vpop.permute.xlu0 %870
      %v873 = vadd.f32 %v863, %v867
      %v874 = vadd.f32 %v864, %v871
      %v875 = vmax.f32 %v873, 0.0
      %v876 = vmax.f32 %v874, 0.0
      %v877 = vld [vmem:[%s7] sm:$0xff]
      %v878 = vld [vmem:[%s7 + $0x8] sm:$0xff]
      %v879 = vld [vmem:[%s7 + $0x10] sm:$0xff]
      %v880 = vld [vmem:[%s7 + $0x18] sm:$0xff]
      %v881 = vld [vmem:[%s7 + $0x20] sm:$0xff]
      %v882 = vld [vmem:[%s8] sm:$0xff]
      %v883 = vld [vmem:[%s8 + $0x8] sm:$0xff]
      %v884 = vld [vmem:[%s8 + $0x10] sm:$0xff]
      %v885 = vld [vmem:[%s8 + $0x18] sm:$0xff]
      %v886 = vld [vmem:[%s8 + $0x20] sm:$0xff]
      %888 = vset.pattern.permute.xlu0 0
      %889 = vperm.xlu0 %888, %v882
      %v890 = vpop.permute.xlu0 %889
      %893 = vset.pattern.permute.xlu0 0
      %894 = vperm.xlu0 %893, %v883
      %v895 = vpop.permute.xlu0 %894
      %898 = vset.pattern.permute.xlu0 0
      %899 = vperm.xlu0 %898, %v884
      %v900 = vpop.permute.xlu0 %899
      %903 = vset.pattern.permute.xlu0 0
      %904 = vperm.xlu0 %903, %v885
      %v905 = vpop.permute.xlu0 %904
      %908 = vset.pattern.permute.xlu0 0
      %909 = vperm.xlu0 %908, %v886
      %v910 = vpop.permute.xlu0 %909
      %v913 = vsel %vm494, %v877, 0
      %v916 = vsel %vm494, %v878, 0
      %v919 = vsel %vm494, %v879, 0
      %v922 = vsel %vm494, %v880, 0
      %v925 = vsel %vm494, %v881, 0
      %927 = vmatprep.subr.mxu0 0.0
      %928 = vmatpush1.msra.mxu0 %v875
      %929 = vmatprep.subr.mxu0 0.0
      %930 = vmatpush1.msra.mxu0 %v876
      %931 = vmatprep.subr.mxu0 0.0
      %932 = vmatpush1.msra.mxu0 0.0
      %933 = vmatprep.subr.mxu0 0.0
      %934 = vmatpush1.msra.mxu0 0.0
      %935 = vmatprep.subr.mxu0 0.0
      %936 = vmatpush1.msra.mxu0 0.0
      %937 = vmatprep.subr.mxu0 0.0
      %938 = vmatpush1.msra.mxu0 0.0
      %939 = vmatprep.subr.mxu0 0.0
      %940 = vmatpush1.msra.mxu0 0.0
      %941 = vmatprep.subr.mxu0 0.0
      %942 = vmatpush1.msra.mxu0 0.0
      %943 = vmatprep.subr.mxu0 0.0
      %944 = vmatpush1.msra.mxu0 0.0
      %945 = vmatprep.subr.mxu0 0.0
      %946 = vmatpush1.msra.mxu0 0.0
      %947 = vmatprep.subr.mxu0 0.0
      %948 = vmatpush1.msra.mxu0 0.0
      %949 = vmatprep.subr.mxu0 0.0
      %950 = vmatpush1.msra.mxu0 0.0
      %951 = vmatprep.subr.mxu0 0.0
      %952 = vmatpush1.msra.mxu0 0.0
      %953 = vmatprep.subr.mxu0 0.0
      %954 = vmatpush1.msra.mxu0 0.0
      %955 = vmatprep.subr.mxu0 0.0
      %956 = vmatpush1.msra.mxu0 0.0
      %957 = vmatprep.subr.mxu0 0.0
      %958 = vmatpush1.msra.mxu0 0.0
      %959 = vmatprep.subr.mxu0 0.0
      %960 = vmatpush1.msra.mxu0 0.0
      %961 = vmatprep.subr.mxu0 0.0
      %962 = vmatpush1.msra.mxu0 0.0
      %963 = vmatprep.subr.mxu0 0.0
      %964 = vmatpush1.msra.mxu0 0.0
      %965 = vmatprep.subr.mxu0 0.0
      %966 = vmatpush1.msra.mxu0 0.0
      %967 = vmatprep.subr.mxu0 0.0
      %968 = vmatpush1.msra.mxu0 0.0
      %969 = vmatprep.subr.mxu0 0.0
      %970 = vmatpush1.msra.mxu0 0.0
      %971 = vmatprep.subr.mxu0 0.0
      %972 = vmatpush1.msra.mxu0 0.0
      %973 = vmatprep.subr.mxu0 0.0
      %974 = vmatpush1.msra.mxu0 0.0
      %975 = vmatprep.subr.mxu0 0.0
      %976 = vmatpush1.msra.mxu0 0.0
      %977 = vmatprep.subr.mxu0 0.0
      %978 = vmatpush1.msra.mxu0 0.0
      %979 = vmatprep.subr.mxu0 0.0
      %980 = vmatpush1.msra.mxu0 0.0
      %981 = vmatprep.subr.mxu0 0.0
      %982 = vmatpush1.msra.mxu0 0.0
      %983 = vmatprep.subr.mxu0 0.0
      %984 = vmatpush1.msra.mxu0 0.0
      %985 = vmatprep.subr.mxu0 0.0
      %986 = vmatpush1.msra.mxu0 0.0
      %987 = vmatprep.subr.mxu0 0.0
      %988 = vmatpush1.msra.mxu0 0.0
      %989 = vmatprep.subr.mxu0 0.0
      %990 = vmatpush1.msra.mxu0 0.0
      %991 = vmatprep.mubr.f32.mxu0 0.0
      %992 = vmatmul.mubr.f32.gmra.mrb[0].mxu0 %v913
      %v993 = vpop.f32.mrb[0].mxu0
      %v994 = vadd.f32 %v890, %v993
      %v995 = vpop.f32.mrb[0].mxu0
      %996 = vmatprep.mubr.f32.mxu0 0.0
      %997 = vmatmul.mubr.f32.gmra.mrb[0].mxu0 %v916
      %v998 = vpop.f32.mrb[0].mxu0
      %v999 = vadd.f32 %v895, %v998
      %v1000 = vpop.f32.mrb[0].mxu0
      %1001 = vmatprep.mubr.f32.mxu0 0.0
      %1002 = vmatmul.mubr.f32.gmra.mrb[0].mxu0 %v919
      %v1003 = vpop.f32.mrb[0].mxu0
      %v1004 = vadd.f32 %v900, %v1003
      %v1005 = vpop.f32.mrb[0].mxu0
      %1006 = vmatprep.mubr.f32.mxu0 0.0
      %1007 = vmatmul.mubr.f32.gmra.mrb[0].mxu0 %v922
      %v1008 = vpop.f32.mrb[0].mxu0
      %v1009 = vadd.f32 %v905, %v1008
      %v1010 = vpop.f32.mrb[0].mxu0
      %1011 = vmatprep.mubr.f32.mxu0 0.0
      %1012 = vmatmul.mubr.f32.gmra.mrb[0].mxu0 %v925
      %v1013 = vpop.f32.mrb[0].mxu0
      %v1014 = vadd.f32 %v910, %v1013
      %v1015 = vpop.f32.mrb[0].mxu0
      %1016 = vdwg.mxu0
      %1017 = vst.msk [vmem:[%s363] sm:$0xff] %vm494, %v994
      %1018 = vst.msk [vmem:[%s363 + $0x8] sm:$0xff] %vm494, %v999
      %1019 = vst.msk [vmem:[%s363 + $0x10] sm:$0xff] %vm494, %v1004
      %1020 = vst.msk [vmem:[%s363 + $0x18] sm:$0xff] %vm494, %v1009
      %1021 = vst.msk [vmem:[%s363 + $0x20] sm:$0xff] %vm494, %v1014
      %p1022 = scmp.lt.s32.totalorder %s24, 1
      %s1023 = scalar_select %p1022, %s24, 1
      %p1024 = scmp.lt.s32.totalorder %s25, 0
      %s1025 = scalar_select %p1024, %s25, 0
      %s1026 = smul.addr %s1023, 5
      %s1027 = sadd.s32 %s1025, %s1026
      %s1028 = smul.addr %s1027, 8
      %s1029 = scalar_lea.vmem %s9, %s1028
      // Predicated region
      $region57: #{tpu_custom_call.1} parent=55 // pred_check
        %p1030 = pneg %p248
      $region58: #{tpu_custom_call.1} parent=55 // pred_check_branch
        %1032 = sbr.rel (%p1030) target = $region60
      $region59: #{tpu_custom_call.1} parent=55 // pred_region
        _
      $region60: #{tpu_custom_call.1} parent=55 // pred_fallthru
        _
    $region56: #{tpu_custom_call.1} parent=5 // pred_fallthru
      _
    %p1033 = scmp.le.s32.totalorder 2, %s15
    // Predicated region
    $region61: #{tpu_custom_call.1} parent=5 // pred_check
      %p1034 = pneg %p1033
    $region62: #{tpu_custom_call.1} parent=5 // pred_check_branch
      %1036 = sbr.rel (%p1034) target = $region64
    $region63: #{tpu_custom_call.1} parent=5 // pred_region
      %s1037 = ssub.s32 %s15, 2
      // Predicated region
      $region65: #{tpu_custom_call.1} parent=63 // pred_check
        %p1038 = pneg %p254
      $region66: #{tpu_custom_call.1} parent=63 // pred_check_branch
        %1040 = sbr.rel (%p1038) target = $region68
      $region67: #{tpu_custom_call.1} parent=63 // pred_region
        %p1041 = scmp.lt.s32.totalorder %s26, 1
        %s1042 = scalar_select %p1041, %s26, 1
        %p1043 = scmp.lt.s32.totalorder %s27, 0
        %s1044 = scalar_select %p1043, %s27, 0
        %s1045 = smul.addr %s1042, 5
        %s1046 = sadd.s32 %s1044, %s1045
        %s1047 = smul.addr %s1046, 8
        %s1048 = scalar_lea.vmem %s9, %s1047
      $region68: #{tpu_custom_call.1} parent=63 // pred_fallthru
        _
    $region64: #{tpu_custom_call.1} parent=5 // pred_fallthru
      _
  $region6: #{tpu_custom_call.1} parent=0 // loop_footer
    %s19 = sadd.s32 1, %s15
  $region7: #{tpu_custom_call.1} parent=0 // loop_footer_branch
    %14 = sbr.rel target = $region3
  $region8: #{tpu_custom_call.1} parent=0 // loop_exit
    _

</llo_original>
